<compile_context>
chip_gen: v7x
topology: tpu7x:2x2x1
jax: 0.10.0
libtpu: 0.0.40
codegen_flags: <defaults>
</compile_context>

<pallas_src>
import functools

import jax
import jax.numpy as jnp
from jax.experimental import pallas as pl
from jax.experimental.pallas import tpu as pltpu


def _round_up(x, m):
    return ((x + m - 1) // m) * m


def gaussian_encoder_kernel(x_ref, w1_ref, b1_ref, w2_ref, b2_ref,
                            w3_ref, b3_ref, out_ref):
    # x_ref: (TB, D) bf16; w1: (D, H) bf16; w2: (H, H) bf16; w3: (H, 2M) bf16
    # biases: (1, *) f32; out_ref: (TB, 2M) f32 = [mean | exp(std)]
    x = x_ref[...]

    h1 = jnp.dot(x, w1_ref[...], preferred_element_type=jnp.float32) + b1_ref[...]
    h1 = jnp.maximum(h1, 0.0)

    h2 = jnp.dot(h1.astype(w2_ref.dtype), w2_ref[...],
                 preferred_element_type=jnp.float32) + b2_ref[...]
    h2 = jnp.maximum(h2, 0.0)

    out = jnp.dot(h2.astype(w3_ref.dtype), w3_ref[...],
                  preferred_element_type=jnp.float32) + b3_ref[...]

    # torch.chunk(out, 2, -1): first half -> mean (identity), second half ->
    # std, and scale = exp(std).  Apply exp on-lane via a mask and emit one
    # lane-dense store instead of two narrow, non-128-aligned stores.
    m = out_ref.shape[-1] // 2
    lane = jax.lax.broadcasted_iota(jnp.int32, out.shape, dimension=1)
    out = jnp.where(lane >= m, jnp.exp(out), out)
    out_ref[...] = out.astype(out_ref.dtype)


@functools.partial(jax.jit, static_argnames=("tile_b",))
def gaussian_encoder(x, params, tile_b=256):
    """x: (B, F1, F2) float32.  Returns (mean, scale), each (B, M)."""
    w1, b1, w2, b2, w3, b3 = params
    B = x.shape[0]
    D = x.shape[1] * x.shape[2]
    H = w1.shape[1]
    out_dim = w3.shape[1]          # 2M
    M = out_dim // 2

    # Glue: flatten feature dims; cast matmul inputs to bf16 (f32 accumulate
    # happens inside the kernel).
    x_flat = x.reshape(B, D).astype(jnp.bfloat16)
    w1b = w1.astype(jnp.bfloat16)
    w2b = w2.astype(jnp.bfloat16)
    w3b = w3.astype(jnp.bfloat16)

    # Batch tile: multiple of 8 (sublane), capped at (padded) B.
    # For real workloads use >=256 rows (fills the 2x256^2 MXU on v6e/v7x);
    # if TB*D grows large, raise vmem_limit_bytes (16 MiB default on v5e,
    # 32 MiB on v6e/v7x; v7x only has 64 MiB physical).
    tb = _round_up(min(tile_b, _round_up(B, 8)), 8)
    n_blocks = pl.cdiv(B, tb)
    b_pad = n_blocks * tb
    if b_pad != B:
        x_flat = jnp.pad(x_flat, ((0, b_pad - B), (0, 0)))

    row_spec = lambda r, c: pl.BlockSpec((r, c), lambda i: (i, 0))
    res_spec = lambda r, c: pl.BlockSpec((r, c), lambda i: (0, 0))  # VMEM-resident

    out = pl.pallas_call(
        gaussian_encoder_kernel,
        out_shape=jax.ShapeDtypeStruct((b_pad, out_dim), jnp.float32),
        grid=(n_blocks,),
        in_specs=[
            row_spec(tb, D),                                   # x tile
            res_spec(D, H), res_spec(1, H),                    # layer 1
            res_spec(H, H), res_spec(1, H),                    # layer 2
            res_spec(H, out_dim), res_spec(1, out_dim),        # layer 3
        ],
        out_specs=row_spec(tb, out_dim),
        compiler_params=pltpu.CompilerParams(
            dimension_semantics=("parallel",),   # megacore split on v7x
        ),
    )(x_flat, w1b, b1, w2b, b2, w3b, b3)

    out = out[:B]
    mean = out[:, :M]
    scale = out[:, M:]
    # TODO(synk): torch.distributions.Independent(Normal(...), 1) has no Pallas
    # equivalent; we return the distribution parameters (mean, scale) instead.
    return mean, scale


def init_params(key, d_in, hidden, latent_m):
    k1, k2, k3 = jax.random.split(key, 3)
    w1 = jax.random.normal(k1, (d_in, hidden), jnp.float32) * 0.05
    b1 = jnp.zeros((1, hidden), jnp.float32)
    w2 = jax.random.normal(k2, (hidden, hidden), jnp.float32) * 0.05
    b2 = jnp.zeros((1, hidden), jnp.float32)
    w3 = jax.random.normal(k3, (hidden, 2 * latent_m), jnp.float32) * 0.05
    b3 = jnp.zeros((1, 2 * latent_m), jnp.float32)
    return (w1, b1, w2, b2, w3, b3)


def reference(x, params):
    w1, b1, w2, b2, w3, b3 = params
    B = x.shape[0]
    xf = x.reshape(B, -1)
    h1 = jnp.maximum(xf @ w1 + b1, 0.0)
    h2 = jnp.maximum(h1 @ w2 + b2, 0.0)
    out = h2 @ w3 + b3
    m = out.shape[-1] // 2
    return out[:, :m], jnp.exp(out[:, m:])


if __name__ == "__main__":
    key = jax.random.PRNGKey(0)
    kx, kp = jax.random.split(key)

    B, F1, F2 = 16, 16, 16    # (batch_size, feature_dim1, feature_dim2)
    H, M = 128, 16            # hidden width, latent dim (encoder outputs 2M)

    x = jax.random.normal(kx, (B, F1, F2), jnp.float32)
    params = init_params(kp, F1 * F2, H, M)

    # tile_b=8 at this demo size so the batch grid actually has >1 step;
    # real workloads should use the default (256).
    mean, scale = gaussian_encoder(x, params, tile_b=8)
    jax.block_until_ready((mean, scale))

    mean_ref, scale_ref = reference(x, params)
    assert mean.shape == (B, M) and scale.shape == (B, M)
    # bf16 matmul inputs with f32 accumulation -> looser tolerance than f32.
    assert jnp.allclose(mean, mean_ref, atol=5e-2, rtol=5e-2)
    assert jnp.allclose(scale, scale_ref, atol=5e-2, rtol=5e-2)
    assert bool(jnp.all(scale > 0))

    print("KERNEL_OK")
</pallas_src>

<mosaic_0001>
module attributes {stable_mosaic.version = 11 : i64} {
  func.func @gaussian_encoder_kernel(%arg0: i32, %arg1: memref<8x256xbf16, #tpu.memory_space<vmem>>, %arg2: memref<256x128xbf16, #tpu.memory_space<vmem>>, %arg3: memref<1x128xf32, #tpu.memory_space<vmem>>, %arg4: memref<128x128xbf16, #tpu.memory_space<vmem>>, %arg5: memref<1x128xf32, #tpu.memory_space<vmem>>, %arg6: memref<128x32xbf16, #tpu.memory_space<vmem>>, %arg7: memref<1x32xf32, #tpu.memory_space<vmem>>, %arg8: memref<8x32xf32, #tpu.memory_space<vmem>>) attributes {dimension_semantics = [#tpu.dimension_semantics<parallel>], iteration_bounds = array<i64: 2>, scalar_prefetch = 0 : i64, scratch_operands = 0 : i64, tpu.core_type = #tpu.core_type<tc>, window_params = [{transform_indices = @transform_0, window_bounds = array<i64: 8, 256>}, {pipeline_mode = #tpu.pipeline_mode<synchronous>, transform_indices = @transform_1, window_bounds = array<i64: 256, 128>}, {pipeline_mode = #tpu.pipeline_mode<synchronous>, transform_indices = @transform_2, window_bounds = array<i64: 1, 128>}, {pipeline_mode = #tpu.pipeline_mode<synchronous>, transform_indices = @transform_3, window_bounds = array<i64: 128, 128>}, {pipeline_mode = #tpu.pipeline_mode<synchronous>, transform_indices = @transform_4, window_bounds = array<i64: 1, 128>}, {pipeline_mode = #tpu.pipeline_mode<synchronous>, transform_indices = @transform_5, window_bounds = array<i64: 128, 32>}, {pipeline_mode = #tpu.pipeline_mode<synchronous>, transform_indices = @transform_6, window_bounds = array<i64: 1, 32>}, {transform_indices = @transform_7, window_bounds = array<i64: 8, 32>}]} {
    %c0 = arith.constant 0 : index
    %c0_0 = arith.constant 0 : index
    %0 = vector.load %arg1[%c0, %c0_0] : memref<8x256xbf16, #tpu.memory_space<vmem>>, vector<8x256xbf16>
    %c0_1 = arith.constant 0 : index
    %c0_2 = arith.constant 0 : index
    %1 = vector.load %arg2[%c0_1, %c0_2] : memref<256x128xbf16, #tpu.memory_space<vmem>>, vector<256x128xbf16>
    %cst = arith.constant dense<0.000000e+00> : vector<8x128xf32>
    %2 = tpu.matmul %0, %1, %cst {dimension_numbers = #tpu.dot_dimension_numbers<[1], [0], [0], [1], [0, 0, 1, 1], [], []>} : vector<8x256xbf16>, vector<256x128xbf16>, vector<8x128xf32> -> vector<8x128xf32>
    %c0_3 = arith.constant 0 : index
    %c0_4 = arith.constant 0 : index
    %3 = vector.load %arg3[%c0_3, %c0_4] : memref<1x128xf32, #tpu.memory_space<vmem>>, vector<1x128xf32>
    %4 = vector.broadcast %3 : vector<1x128xf32> to vector<8x128xf32>
    %5 = arith.addf %2, %4 : vector<8x128xf32>
    %cst_5 = arith.constant 0.000000e+00 : f32
    %6 = vector.broadcast %cst_5 : f32 to vector<8x128xf32>
    %7 = arith.maximumf %5, %6 : vector<8x128xf32>
    %8 = arith.truncf %7 : vector<8x128xf32> to vector<8x128xbf16>
    %c0_6 = arith.constant 0 : index
    %c0_7 = arith.constant 0 : index
    %9 = vector.load %arg4[%c0_6, %c0_7] : memref<128x128xbf16, #tpu.memory_space<vmem>>, vector<128x128xbf16>
    %cst_8 = arith.constant dense<0.000000e+00> : vector<8x128xf32>
    %10 = tpu.matmul %8, %9, %cst_8 {dimension_numbers = #tpu.dot_dimension_numbers<[1], [0], [0], [1], [0, 0, 1, 1], [], []>} : vector<8x128xbf16>, vector<128x128xbf16>, vector<8x128xf32> -> vector<8x128xf32>
    %c0_9 = arith.constant 0 : index
    %c0_10 = arith.constant 0 : index
    %11 = vector.load %arg5[%c0_9, %c0_10] : memref<1x128xf32, #tpu.memory_space<vmem>>, vector<1x128xf32>
    %12 = vector.broadcast %11 : vector<1x128xf32> to vector<8x128xf32>
    %13 = arith.addf %10, %12 : vector<8x128xf32>
    %cst_11 = arith.constant 0.000000e+00 : f32
    %14 = vector.broadcast %cst_11 : f32 to vector<8x128xf32>
    %15 = arith.maximumf %13, %14 : vector<8x128xf32>
    %16 = arith.truncf %15 : vector<8x128xf32> to vector<8x128xbf16>
    %c0_12 = arith.constant 0 : index
    %c0_13 = arith.constant 0 : index
    %17 = vector.load %arg6[%c0_12, %c0_13] : memref<128x32xbf16, #tpu.memory_space<vmem>>, vector<128x32xbf16>
    %cst_14 = arith.constant dense<0.000000e+00> : vector<8x32xf32>
    %18 = tpu.matmul %16, %17, %cst_14 {dimension_numbers = #tpu.dot_dimension_numbers<[1], [0], [0], [1], [0, 0, 1, 1], [], []>} : vector<8x128xbf16>, vector<128x32xbf16>, vector<8x32xf32> -> vector<8x32xf32>
    %c0_15 = arith.constant 0 : index
    %c0_16 = arith.constant 0 : index
    %19 = vector.load %arg7[%c0_15, %c0_16] : memref<1x32xf32, #tpu.memory_space<vmem>>, vector<1x32xf32>
    %20 = vector.broadcast %19 : vector<1x32xf32> to vector<8x32xf32>
    %21 = arith.addf %18, %20 : vector<8x32xf32>
    %22 = tpu.iota {dimensions = array<i32: 1>} : vector<8x32xi32>
    %c16_i32 = arith.constant 16 : i32
    %23 = vector.broadcast %c16_i32 : i32 to vector<8x32xi32>
    %24 = arith.cmpi sge, %22, %23 : vector<8x32xi32>
    %25 = math.exp %21 : vector<8x32xf32>
    %26 = arith.select %24, %25, %21 : vector<8x32xi1>, vector<8x32xf32>
    %c0_17 = arith.constant 0 : index
    %c0_18 = arith.constant 0 : index
    %27 = vector.load %arg8[%c0_17, %c0_18] : memref<8x32xf32, #tpu.memory_space<vmem>>, vector<8x32xf32>
    tpu.vector_store %arg8[%c0_17, %c0_18], %26 {strides = array<i32>} : memref<8x32xf32, #tpu.memory_space<vmem>>, vector<8x32xf32>,
    return
  }
  func.func @transform_0(%arg0: i32) -> (i32, i32) {
    %c0_i32 = arith.constant 0 : i32
    %c0_i32_0 = arith.constant 0 : i32
    return %arg0, %c0_i32 : i32, i32
  }
  func.func @transform_1(%arg0: i32) -> (i32, i32) {
    %c0_i32 = arith.constant 0 : i32
    %c0_i32_0 = arith.constant 0 : i32
    %c0_i32_1 = arith.constant 0 : i32
    return %c0_i32, %c0_i32_0 : i32, i32
  }
  func.func @transform_2(%arg0: i32) -> (i32, i32) {
    %c0_i32 = arith.constant 0 : i32
    %c0_i32_0 = arith.constant 0 : i32
    %c0_i32_1 = arith.constant 0 : i32
    return %c0_i32, %c0_i32_0 : i32, i32
  }
  func.func @transform_3(%arg0: i32) -> (i32, i32) {
    %c0_i32 = arith.constant 0 : i32
    %c0_i32_0 = arith.constant 0 : i32
    %c0_i32_1 = arith.constant 0 : i32
    return %c0_i32, %c0_i32_0 : i32, i32
  }
  func.func @transform_4(%arg0: i32) -> (i32, i32) {
    %c0_i32 = arith.constant 0 : i32
    %c0_i32_0 = arith.constant 0 : i32
    %c0_i32_1 = arith.constant 0 : i32
    return %c0_i32, %c0_i32_0 : i32, i32
  }
  func.func @transform_5(%arg0: i32) -> (i32, i32) {
    %c0_i32 = arith.constant 0 : i32
    %c0_i32_0 = arith.constant 0 : i32
    %c0_i32_1 = arith.constant 0 : i32
    return %c0_i32, %c0_i32_0 : i32, i32
  }
  func.func @transform_6(%arg0: i32) -> (i32, i32) {
    %c0_i32 = arith.constant 0 : i32
    %c0_i32_0 = arith.constant 0 : i32
    %c0_i32_1 = arith.constant 0 : i32
    return %c0_i32, %c0_i32_0 : i32, i32
  }
  func.func @transform_7(%arg0: i32) -> (i32, i32) {
    %c0_i32 = arith.constant 0 : i32
    %c0_i32_0 = arith.constant 0 : i32
    return %arg0, %c0_i32 : i32, i32
  }
}

</mosaic_0001>

<llo_original>
// kernel: gaussian_encoder.1
$region0: #{gaussian_encoder.1}
  #allocation0 [shape = 'u32[]', space=smem, size = 0x4, offset = 0x4, fixed_abs, tag = 'smem constant byte address 0x4 - core index']
  #allocation1 [shape = 'u32[144,128]{1,0:T(1,128)}', space=vmem, size = 0x12000, scoped, tag = 'internal scratch']
  %s0 = inlined_call_operand.vmem [shape: bf16[16,256], index: 0, kind: input, shape index: {}]
  %s1 = inlined_call_operand.vmem [shape: bf16[256,128], index: 1, kind: input, shape index: {}]
  %s2 = inlined_call_operand.vmem [shape: f32[1,128], index: 2, kind: input, shape index: {}]
  %s3 = inlined_call_operand.vmem [shape: bf16[128,128], index: 3, kind: input, shape index: {}]
  %s4 = inlined_call_operand.vmem [shape: f32[1,128], index: 4, kind: input, shape index: {}]
  %s5 = inlined_call_operand.vmem [shape: bf16[128,32], index: 5, kind: input, shape index: {}]
  %s6 = inlined_call_operand.vmem [shape: f32[1,32], index: 6, kind: input, shape index: {}]
  %s7 = inlined_call_operand.vmem [shape: f32[16,32], index: 7, kind: output, shape index: {}]
  %s8 = sld [smem:[#allocation0]]
  $region61: #{gaussian_encoder.1} parent=0
    _
  %s10 = ssub.s32 1, %s8
  %s11 = scalar_select 0, %s10, %s8
  loop: start=0, step=1, limit=4
  $region2: #{gaussian_encoder.1} parent=0 // loop_pre_header
    _
  $region3: #{gaussian_encoder.1} parent=0 // loop_header
    %s13 = sphi 0, %s17
    %p14 = scmp.ge.s32.totalorder %s13, 4
    %s23 = sphi 0, %s25
    %s26 = sphi 0, %s23
    %s27 = sphi 0, %s26
    %s43 = sphi 0, %s27
    %s47 = sphi 0, %s47
    %s49 = sphi 0, %s47
    %s50 = sphi 0, %s49
    %s64 = sphi 0, %s50
    %s68 = sphi 0, %s68
    %s70 = sphi 0, %s68
    %s71 = sphi 0, %s70
    %s85 = sphi 0, %s71
    %s89 = sphi 0, %s89
    %s91 = sphi 0, %s89
    %s92 = sphi 0, %s91
    %s106 = sphi 0, %s92
    %s110 = sphi 0, %s110
    %s112 = sphi 0, %s110
    %s113 = sphi 0, %s112
    %s127 = sphi 0, %s113
    %s131 = sphi 0, %s131
    %s133 = sphi 0, %s131
    %s134 = sphi 0, %s133
    %s148 = sphi 0, %s134
    %s152 = sphi 0, %s152
    %s154 = sphi 0, %s152
    %s155 = sphi 0, %s154
    %s169 = sphi 0, %s155
    %s175 = sphi 0, %s177
    %s178 = sphi 0, %s175
    %s179 = sphi 0, %s178
    %s195 = sphi 0, %s179
  $region4: #{gaussian_encoder.1} parent=0 // loop_header_branch
    %16 = sbr.rel (%p14) target = $region8
  $region5: #{gaussian_encoder.1} parent=0 // loop_body
    %s18 = ssub.s32 %s13, 1
    %s19 = ssub.s32 %s13, 2
    %s20 = sadd.s32 %s13, 1
    %s21 = ssub.s32 %s13, %s20
    %p22 = scmp.eq.s32.totalorder %s21, 0
    %s24 = sadd.s32 %s23, 1
    %s25 = scalar_select %p22, %s23, %s24
    %p28 = pneg %p22
    %p29 = scmp.eq.s32.totalorder %s13, 1
    %p30 = por %p28, %p29
    %p31 = scmp.ne.s32.totalorder %s23, %s26
    %p32 = scmp.eq.s32.totalorder %s13, 0
    %p33 = por %p31, %p32
    %p34 = scmp.ne.s32.totalorder %s23, %s26
    %p35 = scmp.eq.s32.totalorder %s18, 1
    %p36 = por %p34, %p35
    %p37 = scmp.ne.s32.totalorder %s26, %s27
    %p38 = scmp.eq.s32.totalorder %s18, 0
    %p39 = por %p37, %p38
    %p40 = scmp.ne.s32.totalorder %s26, %s27
    %p41 = scmp.eq.s32.totalorder %s19, 1
    %p42 = por %p40, %p41
    %p44 = scmp.ne.s32.totalorder %s27, %s43
    %p45 = scmp.eq.s32.totalorder %s19, 0
    %p46 = por %p44, %p45
    %s48 = sadd.s32 %s47, 1
    %p51 = scmp.eq.s32.totalorder %s13, 1
    %p52 = scmp.ne.s32.totalorder %s47, %s49
    %p53 = scmp.eq.s32.totalorder %s13, 0
    %p54 = por %p52, %p53
    %p55 = scmp.ne.s32.totalorder %s47, %s49
    %p56 = scmp.eq.s32.totalorder %s18, 1
    %p57 = por %p55, %p56
    %p58 = scmp.ne.s32.totalorder %s49, %s50
    %p59 = scmp.eq.s32.totalorder %s18, 0
    %p60 = por %p58, %p59
    %p61 = scmp.ne.s32.totalorder %s49, %s50
    %p62 = scmp.eq.s32.totalorder %s19, 1
    %p63 = por %p61, %p62
    %p65 = scmp.ne.s32.totalorder %s50, %s64
    %p66 = scmp.eq.s32.totalorder %s19, 0
    %p67 = por %p65, %p66
    %s69 = sadd.s32 %s68, 1
    %p72 = scmp.eq.s32.totalorder %s13, 1
    %p73 = scmp.ne.s32.totalorder %s68, %s70
    %p74 = scmp.eq.s32.totalorder %s13, 0
    %p75 = por %p73, %p74
    %p76 = scmp.ne.s32.totalorder %s68, %s70
    %p77 = scmp.eq.s32.totalorder %s18, 1
    %p78 = por %p76, %p77
    %p79 = scmp.ne.s32.totalorder %s70, %s71
    %p80 = scmp.eq.s32.totalorder %s18, 0
    %p81 = por %p79, %p80
    %p82 = scmp.ne.s32.totalorder %s70, %s71
    %p83 = scmp.eq.s32.totalorder %s19, 1
    %p84 = por %p82, %p83
    %p86 = scmp.ne.s32.totalorder %s71, %s85
    %p87 = scmp.eq.s32.totalorder %s19, 0
    %p88 = por %p86, %p87
    %s90 = sadd.s32 %s89, 1
    %p93 = scmp.eq.s32.totalorder %s13, 1
    %p94 = scmp.ne.s32.totalorder %s89, %s91
    %p95 = scmp.eq.s32.totalorder %s13, 0
    %p96 = por %p94, %p95
    %p97 = scmp.ne.s32.totalorder %s89, %s91
    %p98 = scmp.eq.s32.totalorder %s18, 1
    %p99 = por %p97, %p98
    %p100 = scmp.ne.s32.totalorder %s91, %s92
    %p101 = scmp.eq.s32.totalorder %s18, 0
    %p102 = por %p100, %p101
    %p103 = scmp.ne.s32.totalorder %s91, %s92
    %p104 = scmp.eq.s32.totalorder %s19, 1
    %p105 = por %p103, %p104
    %p107 = scmp.ne.s32.totalorder %s92, %s106
    %p108 = scmp.eq.s32.totalorder %s19, 0
    %p109 = por %p107, %p108
    %s111 = sadd.s32 %s110, 1
    %p114 = scmp.eq.s32.totalorder %s13, 1
    %p115 = scmp.ne.s32.totalorder %s110, %s112
    %p116 = scmp.eq.s32.totalorder %s13, 0
    %p117 = por %p115, %p116
    %p118 = scmp.ne.s32.totalorder %s110, %s112
    %p119 = scmp.eq.s32.totalorder %s18, 1
    %p120 = por %p118, %p119
    %p121 = scmp.ne.s32.totalorder %s112, %s113
    %p122 = scmp.eq.s32.totalorder %s18, 0
    %p123 = por %p121, %p122
    %p124 = scmp.ne.s32.totalorder %s112, %s113
    %p125 = scmp.eq.s32.totalorder %s19, 1
    %p126 = por %p124, %p125
    %p128 = scmp.ne.s32.totalorder %s113, %s127
    %p129 = scmp.eq.s32.totalorder %s19, 0
    %p130 = por %p128, %p129
    %s132 = sadd.s32 %s131, 1
    %p135 = scmp.eq.s32.totalorder %s13, 1
    %p136 = scmp.ne.s32.totalorder %s131, %s133
    %p137 = scmp.eq.s32.totalorder %s13, 0
    %p138 = por %p136, %p137
    %p139 = scmp.ne.s32.totalorder %s131, %s133
    %p140 = scmp.eq.s32.totalorder %s18, 1
    %p141 = por %p139, %p140
    %p142 = scmp.ne.s32.totalorder %s133, %s134
    %p143 = scmp.eq.s32.totalorder %s18, 0
    %p144 = por %p142, %p143
    %p145 = scmp.ne.s32.totalorder %s133, %s134
    %p146 = scmp.eq.s32.totalorder %s19, 1
    %p147 = por %p145, %p146
    %p149 = scmp.ne.s32.totalorder %s134, %s148
    %p150 = scmp.eq.s32.totalorder %s19, 0
    %p151 = por %p149, %p150
    %s153 = sadd.s32 %s152, 1
    %p156 = scmp.eq.s32.totalorder %s13, 1
    %p157 = scmp.ne.s32.totalorder %s152, %s154
    %p158 = scmp.eq.s32.totalorder %s13, 0
    %p159 = por %p157, %p158
    %p160 = scmp.ne.s32.totalorder %s152, %s154
    %p161 = scmp.eq.s32.totalorder %s18, 1
    %p162 = por %p160, %p161
    %p163 = scmp.ne.s32.totalorder %s154, %s155
    %p164 = scmp.eq.s32.totalorder %s18, 0
    %p165 = por %p163, %p164
    %p166 = scmp.ne.s32.totalorder %s154, %s155
    %p167 = scmp.eq.s32.totalorder %s19, 1
    %p168 = por %p166, %p167
    %p170 = scmp.ne.s32.totalorder %s155, %s169
    %p171 = scmp.eq.s32.totalorder %s19, 0
    %p172 = por %p170, %p171
    %s173 = ssub.s32 %s13, %s20
    %p174 = scmp.eq.s32.totalorder %s173, 0
    %s176 = sadd.s32 %s175, 1
    %s177 = scalar_select %p174, %s175, %s176
    %p180 = pneg %p174
    %p181 = scmp.eq.s32.totalorder %s13, 1
    %p182 = por %p180, %p181
    %p183 = scmp.ne.s32.totalorder %s175, %s178
    %p184 = scmp.eq.s32.totalorder %s13, 0
    %p185 = por %p183, %p184
    %p186 = scmp.ne.s32.totalorder %s175, %s178
    %p187 = scmp.eq.s32.totalorder %s18, 1
    %p188 = por %p186, %p187
    %p189 = scmp.ne.s32.totalorder %s178, %s179
    %p190 = scmp.eq.s32.totalorder %s18, 0
    %p191 = por %p189, %p190
    %p192 = scmp.ne.s32.totalorder %s178, %s179
    %p193 = scmp.eq.s32.totalorder %s19, 1
    %p194 = por %p192, %p193
    %p196 = scmp.ne.s32.totalorder %s179, %s195
    %p197 = scmp.eq.s32.totalorder %s19, 0
    %p198 = por %p196, %p197
    %p199 = scmp.le.s32.totalorder 1, %s13
    %p200 = scmp.lt.s32.totalorder %s13, 3
    %p201 = pnand %p199, %p200
    %p202 = pneg %p201
    // Predicated region
    $region9: #{gaussian_encoder.1} parent=5 // pred_check
      _
    $region10: #{gaussian_encoder.1} parent=5 // pred_check_branch
      %204 = sbr.rel (%p201) target = $region12
    $region11: #{gaussian_encoder.1} parent=5 // pred_region
      %s205 = ssub.s32 %s13, 1
      // Predicated region
      $region13: #{gaussian_encoder.1} parent=11 // pred_check
        %p206 = pneg %p60
      $region14: #{gaussian_encoder.1} parent=11 // pred_check_branch
        %208 = sbr.rel (%p206) target = $region16
      $region15: #{gaussian_encoder.1} parent=11 // pred_region
        _
      $region16: #{gaussian_encoder.1} parent=11 // pred_fallthru
        _
      // Predicated region
      $region17: #{gaussian_encoder.1} parent=11 // pred_check
        %p209 = pneg %p81
      $region18: #{gaussian_encoder.1} parent=11 // pred_check_branch
        %211 = sbr.rel (%p209) target = $region20
      $region19: #{gaussian_encoder.1} parent=11 // pred_region
        _
      $region20: #{gaussian_encoder.1} parent=11 // pred_fallthru
        _
      // Predicated region
      $region21: #{gaussian_encoder.1} parent=11 // pred_check
        %p212 = pneg %p102
      $region22: #{gaussian_encoder.1} parent=11 // pred_check_branch
        %214 = sbr.rel (%p212) target = $region24
      $region23: #{gaussian_encoder.1} parent=11 // pred_region
        _
      $region24: #{gaussian_encoder.1} parent=11 // pred_fallthru
        _
      // Predicated region
      $region25: #{gaussian_encoder.1} parent=11 // pred_check
        %p215 = pneg %p123
      $region26: #{gaussian_encoder.1} parent=11 // pred_check_branch
        %217 = sbr.rel (%p215) target = $region28
      $region27: #{gaussian_encoder.1} parent=11 // pred_region
        _
      $region28: #{gaussian_encoder.1} parent=11 // pred_fallthru
        _
      // Predicated region
      $region29: #{gaussian_encoder.1} parent=11 // pred_check
        %p218 = pneg %p144
      $region30: #{gaussian_encoder.1} parent=11 // pred_check_branch
        %220 = sbr.rel (%p218) target = $region32
      $region31: #{gaussian_encoder.1} parent=11 // pred_region
        _
      $region32: #{gaussian_encoder.1} parent=11 // pred_fallthru
        _
      // Predicated region
      $region33: #{gaussian_encoder.1} parent=11 // pred_check
        %p221 = pneg %p165
      $region34: #{gaussian_encoder.1} parent=11 // pred_check_branch
        %223 = sbr.rel (%p221) target = $region36
      $region35: #{gaussian_encoder.1} parent=11 // pred_region
        _
      $region36: #{gaussian_encoder.1} parent=11 // pred_fallthru
        _
    $region12: #{gaussian_encoder.1} parent=5 // pred_fallthru
      _
    %p224 = scmp.lt.s32.totalorder %s13, 2
    // Predicated region
    $region37: #{gaussian_encoder.1} parent=5 // pred_check
      %p225 = pneg %p224
    $region38: #{gaussian_encoder.1} parent=5 // pred_check_branch
      %227 = sbr.rel (%p225) target = $region40
    $region39: #{gaussian_encoder.1} parent=5 // pred_region
      // Predicated region
      $region41: #{gaussian_encoder.1} parent=39 // pred_check
        %p228 = pneg %p33
      $region42: #{gaussian_encoder.1} parent=39 // pred_check_branch
        %230 = sbr.rel (%p228) target = $region44
      $region43: #{gaussian_encoder.1} parent=39 // pred_region
        %p231 = scmp.lt.s32.totalorder %s13, 1
        %s232 = scalar_select %p231, %s13, 1
        %s233 = smul.addr %s232, 2
        %s234 = smul.addr %s233, 4
        %s235 = scalar_lea.vmem %s0, %s234
      $region44: #{gaussian_encoder.1} parent=39 // pred_fallthru
        _
    $region40: #{gaussian_encoder.1} parent=5 // pred_fallthru
      _
    %p236 = scmp.le.s32.totalorder 1, %s13
    %p237 = scmp.lt.s32.totalorder %s13, 3
    %p238 = pnand %p236, %p237
    %p239 = pneg %p238
    // Predicated region
    $region45: #{gaussian_encoder.1} parent=5 // pred_check
      _
    $region46: #{gaussian_encoder.1} parent=5 // pred_check_branch
      %241 = sbr.rel (%p238) target = $region48
    $region47: #{gaussian_encoder.1} parent=5 // pred_region
      %s242 = ssub.s32 %s13, 1
      %p243 = scmp.lt.s32.totalorder %s18, 1
      %s244 = scalar_select %p243, %s18, 1
      %s245 = smul.addr %s244, 2
      %s246 = smul.addr %s245, 4
      %s247 = scalar_lea.vmem %s0, %s246
      %p248 = pneg %p39
      %p249 = pneg %p36
      %p250 = pneg %p60
      %p251 = pneg %p57
      %p252 = pneg %p81
      %p253 = pneg %p78
      %p254 = pneg %p102
      %p255 = pneg %p99
      %p256 = pneg %p123
      %p257 = pneg %p120
      %p258 = pneg %p144
      %p259 = pneg %p141
      %p260 = pneg %p165
      %p261 = pneg %p162
      %p262 = pneg %p191
      %p263 = pneg %p188
      %p264 = scmp.lt.s32.totalorder %s18, 1
      %s265 = scalar_select %p264, %s18, 1
      %s266 = smul.addr %s265, 8
      %s267 = scalar_lea.vmem %s7, %s266
      %p268 = scmp.lt.s32.totalorder %s18, 1
      %s269 = scalar_select %p268, %s18, 1
      %s270 = smul.addr %s269, 2
      %s271 = smul.addr %s270, 4
      %s272 = scalar_lea.vmem %s0, %s271
      %p273 = scmp.lt.s32.totalorder %s18, 1
      %s274 = scalar_select %p273, %s18, 1
      %s275 = smul.addr %s274, 8
      %s276 = scalar_lea.vmem %s7, %s275
      %v278 = vld [vmem:[%s272] sm:$0xff]
      %v279 = vld [vmem:[%s1] sm:$0xf]
      %v280 = vld [vmem:[%s1 + $0x4] sm:$0xf]
      %v281 = vld [vmem:[%s1 + $0x8] sm:$0xf]
      %v282 = vld [vmem:[%s1 + $0xc] sm:$0xf]
      %v283 = vld [vmem:[%s1 + $0x10] sm:$0xf]
      %v284 = vld [vmem:[%s1 + $0x14] sm:$0xf]
      %v285 = vld [vmem:[%s1 + $0x18] sm:$0xf]
      %v286 = vld [vmem:[%s1 + $0x1c] sm:$0xf]
      %v287 = vld [vmem:[%s1 + $0x20] sm:$0xf]
      %v288 = vld [vmem:[%s1 + $0x24] sm:$0xf]
      %v289 = vld [vmem:[%s1 + $0x28] sm:$0xf]
      %v290 = vld [vmem:[%s1 + $0x2c] sm:$0xf]
      %v291 = vld [vmem:[%s1 + $0x30] sm:$0xf]
      %v292 = vld [vmem:[%s1 + $0x34] sm:$0xf]
      %v293 = vld [vmem:[%s1 + $0x38] sm:$0xf]
      %v294 = vld [vmem:[%s1 + $0x3c] sm:$0xf]
      %v295 = vld [vmem:[%s1 + $0x40] sm:$0xf]
      %v296 = vld [vmem:[%s1 + $0x44] sm:$0xf]
      %v297 = vld [vmem:[%s1 + $0x48] sm:$0xf]
      %v298 = vld [vmem:[%s1 + $0x4c] sm:$0xf]
      %v299 = vld [vmem:[%s1 + $0x50] sm:$0xf]
      %v300 = vld [vmem:[%s1 + $0x54] sm:$0xf]
      %v301 = vld [vmem:[%s1 + $0x58] sm:$0xf]
      %v302 = vld [vmem:[%s1 + $0x5c] sm:$0xf]
      %v303 = vld [vmem:[%s1 + $0x60] sm:$0xf]
      %v304 = vld [vmem:[%s1 + $0x64] sm:$0xf]
      %v305 = vld [vmem:[%s1 + $0x68] sm:$0xf]
      %v306 = vld [vmem:[%s1 + $0x6c] sm:$0xf]
      %v307 = vld [vmem:[%s1 + $0x70] sm:$0xf]
      %v308 = vld [vmem:[%s1 + $0x74] sm:$0xf]
      %v309 = vld [vmem:[%s1 + $0x78] sm:$0xf]
      %v310 = vld [vmem:[%s1 + $0x7c] sm:$0xf]
      %v311 = vld [vmem:[%s2] sm:$0x1]
      %v313 = vlaneseq
      %v314 = vshrl.u32 %v313, 7
      %v315 = vsub.s32 0, %v314
      %v316 = vrot.slane %v311, %v315
      %v319 = vunpack.c.l.b16 %v278
      %v320 = vunpack.c.h.b16 %v278
      %v321 = vpack.c.b16 %v319, %v319
      %v322 = vpack.c.b16 %v320, %v320
      %v357 = vunpack.c.l.b16 %v279
      %v358 = vunpack.c.l.b16 %v280
      %v359 = vunpack.c.l.b16 %v281
      %v360 = vunpack.c.l.b16 %v282
      %v361 = vunpack.c.l.b16 %v283
      %v362 = vunpack.c.l.b16 %v284
      %v363 = vunpack.c.l.b16 %v285
      %v364 = vunpack.c.l.b16 %v286
      %v365 = vunpack.c.l.b16 %v287
      %v366 = vunpack.c.l.b16 %v288
      %v367 = vunpack.c.l.b16 %v289
      %v368 = vunpack.c.l.b16 %v290
      %v369 = vunpack.c.l.b16 %v291
      %v370 = vunpack.c.l.b16 %v292
      %v371 = vunpack.c.l.b16 %v293
      %v372 = vunpack.c.l.b16 %v294
      %v373 = vunpack.c.l.b16 %v295
      %v374 = vunpack.c.l.b16 %v296
      %v375 = vunpack.c.l.b16 %v297
      %v376 = vunpack.c.l.b16 %v298
      %v377 = vunpack.c.l.b16 %v299
      %v378 = vunpack.c.l.b16 %v300
      %v379 = vunpack.c.l.b16 %v301
      %v380 = vunpack.c.l.b16 %v302
      %v381 = vunpack.c.l.b16 %v303
      %v382 = vunpack.c.l.b16 %v304
      %v383 = vunpack.c.l.b16 %v305
      %v384 = vunpack.c.l.b16 %v306
      %v385 = vunpack.c.l.b16 %v307
      %v386 = vunpack.c.l.b16 %v308
      %v387 = vunpack.c.l.b16 %v309
      %v388 = vunpack.c.l.b16 %v310
      %v389 = vpack.c.b16 %v358, %v357
      %v390 = vpack.c.b16 %v360, %v359
      %v391 = vpack.c.b16 %v362, %v361
      %v392 = vpack.c.b16 %v364, %v363
      %v393 = vpack.c.b16 %v366, %v365
      %v394 = vpack.c.b16 %v368, %v367
      %v395 = vpack.c.b16 %v370, %v369
      %v396 = vpack.c.b16 %v372, %v371
      %v397 = vpack.c.b16 %v374, %v373
      %v398 = vpack.c.b16 %v376, %v375
      %v399 = vpack.c.b16 %v378, %v377
      %v400 = vpack.c.b16 %v380, %v379
      %v401 = vpack.c.b16 %v382, %v381
      %v402 = vpack.c.b16 %v384, %v383
      %v403 = vpack.c.b16 %v386, %v385
      %v404 = vpack.c.b16 %v388, %v387
      %421 = vmatprep.subr.bf16.mxu0 0
      %422 = vmatpush1.bf16.msra.mxu0 %v389
      %423 = vmatprep.subr.bf16.mxu0 0
      %424 = vmatpush1.bf16.msra.mxu0 %v390
      %425 = vmatprep.subr.bf16.mxu0 0
      %426 = vmatpush1.bf16.msra.mxu0 %v391
      %427 = vmatprep.subr.bf16.mxu0 0
      %428 = vmatpush1.bf16.msra.mxu0 %v392
      %429 = vmatprep.subr.bf16.mxu0 0
      %430 = vmatpush1.bf16.msra.mxu0 %v393
      %431 = vmatprep.subr.bf16.mxu0 0
      %432 = vmatpush1.bf16.msra.mxu0 %v394
      %433 = vmatprep.subr.bf16.mxu0 0
      %434 = vmatpush1.bf16.msra.mxu0 %v395
      %435 = vmatprep.subr.bf16.mxu0 0
      %436 = vmatpush1.bf16.msra.mxu0 %v396
      %437 = vmatprep.subr.bf16.mxu0 0
      %438 = vmatpush1.bf16.msra.mxu0 %v397
      %439 = vmatprep.subr.bf16.mxu0 0
      %440 = vmatpush1.bf16.msra.mxu0 %v398
      %441 = vmatprep.subr.bf16.mxu0 0
      %442 = vmatpush1.bf16.msra.mxu0 %v399
      %443 = vmatprep.subr.bf16.mxu0 0
      %444 = vmatpush1.bf16.msra.mxu0 %v400
      %445 = vmatprep.subr.bf16.mxu0 0
      %446 = vmatpush1.bf16.msra.mxu0 %v401
      %447 = vmatprep.subr.bf16.mxu0 0
      %448 = vmatpush1.bf16.msra.mxu0 %v402
      %449 = vmatprep.subr.bf16.mxu0 0
      %450 = vmatpush1.bf16.msra.mxu0 %v403
      %451 = vmatprep.subr.bf16.mxu0 0
      %452 = vmatpush1.bf16.msra.mxu0 %v404
      %453 = vmatprep.mubr.bf16.mxu0 %v322
      %454 = vmatmul.mubr.bf16.gmra.mrb[0].mxu0 %v321
      %v455 = vpop.f32.mrb[0].mxu0
      %v456 = vadd.f32 %v316, %v455
      %v457 = vpop.f32.mrb[0].mxu0
      %v458 = vpop.f32.mrb[0].mxu0
      %v459 = vpop.f32.mrb[0].mxu0
      %460 = vdwg.mxu0
      %v461 = vmax.f32 %v456, 0.0
      %v462 = vpack.c.bf16 %v461, %v461
      %v463 = vld [vmem:[%s3] sm:$0xf]
      %v464 = vld [vmem:[%s3 + $0x4] sm:$0xf]
      %v465 = vld [vmem:[%s3 + $0x8] sm:$0xf]
      %v466 = vld [vmem:[%s3 + $0xc] sm:$0xf]
      %v467 = vld [vmem:[%s3 + $0x10] sm:$0xf]
      %v468 = vld [vmem:[%s3 + $0x14] sm:$0xf]
      %v469 = vld [vmem:[%s3 + $0x18] sm:$0xf]
      %v470 = vld [vmem:[%s3 + $0x1c] sm:$0xf]
      %v471 = vld [vmem:[%s3 + $0x20] sm:$0xf]
      %v472 = vld [vmem:[%s3 + $0x24] sm:$0xf]
      %v473 = vld [vmem:[%s3 + $0x28] sm:$0xf]
      %v474 = vld [vmem:[%s3 + $0x2c] sm:$0xf]
      %v475 = vld [vmem:[%s3 + $0x30] sm:$0xf]
      %v476 = vld [vmem:[%s3 + $0x34] sm:$0xf]
      %v477 = vld [vmem:[%s3 + $0x38] sm:$0xf]
      %v478 = vld [vmem:[%s3 + $0x3c] sm:$0xf]
      %v479 = vld [vmem:[%s4] sm:$0x1]
      %v481 = vlaneseq
      %v482 = vshrl.u32 %v481, 7
      %v483 = vsub.s32 0, %v482
      %v484 = vrot.slane %v479, %v483
      %v502 = vunpack.c.l.b16 %v463
      %v503 = vunpack.c.l.b16 %v464
      %v504 = vunpack.c.l.b16 %v465
      %v505 = vunpack.c.l.b16 %v466
      %v506 = vunpack.c.l.b16 %v467
      %v507 = vunpack.c.l.b16 %v468
      %v508 = vunpack.c.l.b16 %v469
      %v509 = vunpack.c.l.b16 %v470
      %v510 = vunpack.c.l.b16 %v471
      %v511 = vunpack.c.l.b16 %v472
      %v512 = vunpack.c.l.b16 %v473
      %v513 = vunpack.c.l.b16 %v474
      %v514 = vunpack.c.l.b16 %v475
      %v515 = vunpack.c.l.b16 %v476
      %v516 = vunpack.c.l.b16 %v477
      %v517 = vunpack.c.l.b16 %v478
      %v518 = vpack.c.b16 %v503, %v502
      %v519 = vpack.c.b16 %v505, %v504
      %v520 = vpack.c.b16 %v507, %v506
      %v521 = vpack.c.b16 %v509, %v508
      %v522 = vpack.c.b16 %v511, %v510
      %v523 = vpack.c.b16 %v513, %v512
      %v524 = vpack.c.b16 %v515, %v514
      %v525 = vpack.c.b16 %v517, %v516
      %534 = vmatprep.subr.bf16.mxu0 0
      %535 = vmatpush1.bf16.msra.mxu0 %v518
      %536 = vmatprep.subr.bf16.mxu0 0
      %537 = vmatpush1.bf16.msra.mxu0 %v519
      %538 = vmatprep.subr.bf16.mxu0 0
      %539 = vmatpush1.bf16.msra.mxu0 %v520
      %540 = vmatprep.subr.bf16.mxu0 0
      %541 = vmatpush1.bf16.msra.mxu0 %v521
      %542 = vmatprep.subr.bf16.mxu0 0
      %543 = vmatpush1.bf16.msra.mxu0 %v522
      %544 = vmatprep.subr.bf16.mxu0 0
      %545 = vmatpush1.bf16.msra.mxu0 %v523
      %546 = vmatprep.subr.bf16.mxu0 0
      %547 = vmatpush1.bf16.msra.mxu0 %v524
      %548 = vmatprep.subr.bf16.mxu0 0
      %549 = vmatpush1.bf16.msra.mxu0 %v525
      %550 = vmatprep.subr.bf16.mxu0 0
      %551 = vmatpush1.bf16.msra.mxu0 0
      %552 = vmatprep.subr.bf16.mxu0 0
      %553 = vmatpush1.bf16.msra.mxu0 0
      %554 = vmatprep.subr.bf16.mxu0 0
      %555 = vmatpush1.bf16.msra.mxu0 0
      %556 = vmatprep.subr.bf16.mxu0 0
      %557 = vmatpush1.bf16.msra.mxu0 0
      %558 = vmatprep.subr.bf16.mxu0 0
      %559 = vmatpush1.bf16.msra.mxu0 0
      %560 = vmatprep.subr.bf16.mxu0 0
      %561 = vmatpush1.bf16.msra.mxu0 0
      %562 = vmatprep.subr.bf16.mxu0 0
      %563 = vmatpush1.bf16.msra.mxu0 0
      %564 = vmatprep.subr.bf16.mxu0 0
      %565 = vmatpush1.bf16.msra.mxu0 0
      %566 = vmatprep.mubr.bf16.mxu0 0
      %567 = vmatmul.mubr.bf16.gmra.mrb[0].mxu0 %v462
      %v568 = vpop.f32.mrb[0].mxu0
      %v569 = vadd.f32 %v484, %v568
      %v570 = vpop.f32.mrb[0].mxu0
      %v571 = vpop.f32.mrb[0].mxu0
      %v572 = vpop.f32.mrb[0].mxu0
      %573 = vdwg.mxu0
      %v574 = vmax.f32 %v569, 0.0
      %v575 = vpack.c.bf16 %v574, %v574
      %v576 = vld [vmem:[%s5] sm:$0xf]
      %v577 = vld [vmem:[%s5 + $0x4] sm:$0xf]
      %v578 = vld [vmem:[%s5 + $0x8] sm:$0xf]
      %v579 = vld [vmem:[%s5 + $0xc] sm:$0xf]
      %v580 = vld [vmem:[%s5 + $0x10] sm:$0xf]
      %v581 = vld [vmem:[%s5 + $0x14] sm:$0xf]
      %v582 = vld [vmem:[%s5 + $0x18] sm:$0xf]
      %v583 = vld [vmem:[%s5 + $0x1c] sm:$0xf]
      %v584 = vld [vmem:[%s5 + $0x20] sm:$0xf]
      %v585 = vld [vmem:[%s5 + $0x24] sm:$0xf]
      %v586 = vld [vmem:[%s5 + $0x28] sm:$0xf]
      %v587 = vld [vmem:[%s5 + $0x2c] sm:$0xf]
      %v588 = vld [vmem:[%s5 + $0x30] sm:$0xf]
      %v589 = vld [vmem:[%s5 + $0x34] sm:$0xf]
      %v590 = vld [vmem:[%s5 + $0x38] sm:$0xf]
      %v591 = vld [vmem:[%s5 + $0x3c] sm:$0xf]
      %v592 = vld [vmem:[%s6] sm:$0x1]
      %v594 = vlaneseq
      %v595 = vshrl.u32 %v594, 7
      %v596 = vsub.s32 0, %v595
      %v597 = vrot.slane %v592, %v596
      %v615 = vunpack.c.l.b16 %v576
      %v616 = vunpack.c.l.b16 %v577
      %v617 = vunpack.c.l.b16 %v578
      %v618 = vunpack.c.l.b16 %v579
      %v619 = vunpack.c.l.b16 %v580
      %v620 = vunpack.c.l.b16 %v581
      %v621 = vunpack.c.l.b16 %v582
      %v622 = vunpack.c.l.b16 %v583
      %v623 = vunpack.c.l.b16 %v584
      %v624 = vunpack.c.l.b16 %v585
      %v625 = vunpack.c.l.b16 %v586
      %v626 = vunpack.c.l.b16 %v587
      %v627 = vunpack.c.l.b16 %v588
      %v628 = vunpack.c.l.b16 %v589
      %v629 = vunpack.c.l.b16 %v590
      %v630 = vunpack.c.l.b16 %v591
      %v631 = vpack.c.b16 %v616, %v615
      %v632 = vpack.c.b16 %v618, %v617
      %v633 = vpack.c.b16 %v620, %v619
      %v634 = vpack.c.b16 %v622, %v621
      %v635 = vpack.c.b16 %v624, %v623
      %v636 = vpack.c.b16 %v626, %v625
      %v637 = vpack.c.b16 %v628, %v627
      %v638 = vpack.c.b16 %v630, %v629
      %647 = vmatprep.subr.bf16.mxu0 0
      %648 = vmatpush1.bf16.msra.mxu0 %v631
      %649 = vmatprep.subr.bf16.mxu0 0
      %650 = vmatpush1.bf16.msra.mxu0 %v632
      %651 = vmatprep.subr.bf16.mxu0 0
      %652 = vmatpush1.bf16.msra.mxu0 %v633
      %653 = vmatprep.subr.bf16.mxu0 0
      %654 = vmatpush1.bf16.msra.mxu0 %v634
      %655 = vmatprep.subr.bf16.mxu0 0
      %656 = vmatpush1.bf16.msra.mxu0 %v635
      %657 = vmatprep.subr.bf16.mxu0 0
      %658 = vmatpush1.bf16.msra.mxu0 %v636
      %659 = vmatprep.subr.bf16.mxu0 0
      %660 = vmatpush1.bf16.msra.mxu0 %v637
      %661 = vmatprep.subr.bf16.mxu0 0
      %662 = vmatpush1.bf16.msra.mxu0 %v638
      %663 = vmatprep.subr.bf16.mxu0 0
      %664 = vmatpush1.bf16.msra.mxu0 0
      %665 = vmatprep.subr.bf16.mxu0 0
      %666 = vmatpush1.bf16.msra.mxu0 0
      %667 = vmatprep.subr.bf16.mxu0 0
      %668 = vmatpush1.bf16.msra.mxu0 0
      %669 = vmatprep.subr.bf16.mxu0 0
      %670 = vmatpush1.bf16.msra.mxu0 0
      %671 = vmatprep.subr.bf16.mxu0 0
      %672 = vmatpush1.bf16.msra.mxu0 0
      %673 = vmatprep.subr.bf16.mxu0 0
      %674 = vmatpush1.bf16.msra.mxu0 0
      %675 = vmatprep.subr.bf16.mxu0 0
      %676 = vmatpush1.bf16.msra.mxu0 0
      %677 = vmatprep.subr.bf16.mxu0 0
      %678 = vmatpush1.bf16.msra.mxu0 0
      %679 = vmatprep.mubr.bf16.mxu0 0
      %680 = vmatmul.mubr.bf16.gmra.mrb[0].mxu0 %v575
      %v681 = vpop.f32.mrb[0].mxu0
      %v682 = vadd.f32 %v597, %v681
      %v683 = vpop.f32.mrb[0].mxu0
      %v684 = vpop.f32.mrb[0].mxu0
      %v685 = vpop.f32.mrb[0].mxu0
      %686 = vdwg.mxu0
      %v687 = vlaneseq
      %v688 = vand.u32 %v687, 127
      %vm689 = vcmp.ge.s32.totalorder %v688, 16
      %v690 = vmul.f32 %v682, 1.442695
      %v691 = vpow.pop %v690
      %v692 = vsel %vm689, %v691, %v682
      %vm693 = vcmask 261120
      %694 = vst.msk [vmem:[%s276] sm:$0xff] %vm693, %v692
      %p695 = scmp.lt.s32.totalorder %s18, 1
      %s696 = scalar_select %p695, %s18, 1
      %s697 = smul.addr %s696, 8
      %s698 = scalar_lea.vmem %s7, %s697
      // Predicated region
      $region49: #{gaussian_encoder.1} parent=47 // pred_check
        %p699 = pneg %p188
      $region50: #{gaussian_encoder.1} parent=47 // pred_check_branch
        %701 = sbr.rel (%p699) target = $region52
      $region51: #{gaussian_encoder.1} parent=47 // pred_region
        _
      $region52: #{gaussian_encoder.1} parent=47 // pred_fallthru
        _
    $region48: #{gaussian_encoder.1} parent=5 // pred_fallthru
      _
    %p702 = scmp.le.s32.totalorder 2, %s13
    // Predicated region
    $region53: #{gaussian_encoder.1} parent=5 // pred_check
      %p703 = pneg %p702
    $region54: #{gaussian_encoder.1} parent=5 // pred_check_branch
      %705 = sbr.rel (%p703) target = $region56
    $region55: #{gaussian_encoder.1} parent=5 // pred_region
      %s706 = ssub.s32 %s13, 2
      // Predicated region
      $region57: #{gaussian_encoder.1} parent=55 // pred_check
        %p707 = pneg %p194
      $region58: #{gaussian_encoder.1} parent=55 // pred_check_branch
        %709 = sbr.rel (%p707) target = $region60
      $region59: #{gaussian_encoder.1} parent=55 // pred_region
        %p710 = scmp.lt.s32.totalorder %s19, 1
        %s711 = scalar_select %p710, %s19, 1
        %s712 = smul.addr %s711, 8
        %s713 = scalar_lea.vmem %s7, %s712
      $region60: #{gaussian_encoder.1} parent=55 // pred_fallthru
        _
    $region56: #{gaussian_encoder.1} parent=5 // pred_fallthru
      _
  $region6: #{gaussian_encoder.1} parent=0 // loop_footer
    %s17 = sadd.s32 1, %s13
  $region7: #{gaussian_encoder.1} parent=0 // loop_footer_branch
    %12 = sbr.rel target = $region3
  $region8: #{gaussian_encoder.1} parent=0 // loop_exit
    _

</llo_original>
